<compile_context>
chip_gen: v7x
topology: tpu7x:2x2x1
jax: 0.10.0
libtpu: 0.0.40
codegen_flags: <defaults>
</compile_context>

<pallas_src>
import functools

import jax
import jax.numpy as jnp
from jax import lax
from jax.experimental import pallas as pl
from jax.experimental.pallas import tpu as pltpu

NEG_INF = -1e30  # finite "minus infinity" (avoids inf-inf NaNs in the online lse)


def _round_up(n, m):
    return ((n + m - 1) // m) * m


# ---------------------------------------------------------------------------
# Stage 1: linear compression  ctxt = x @ W^T + b  (bf16 out, f32 MXU acc)
# ---------------------------------------------------------------------------
def _compress_kernel(x_ref, w_ref, b_ref, out_ref):
    ctxt = lax.dot_general(
        x_ref[...], w_ref[...],
        dimension_numbers=(((1,), (1,)), ((), ())),   # contract H_ENC of both
        preferred_element_type=jnp.float32) + b_ref[...]
    out_ref[...] = ctxt.astype(out_ref.dtype)


def _compress(xf, wf, bf, tile_m):
    n_p, h_p = xf.shape
    d_p = wf.shape[0]
    return pl.pallas_call(
        _compress_kernel,
        out_shape=jax.ShapeDtypeStruct((n_p, d_p), jnp.bfloat16),
        grid_spec=pltpu.PrefetchScalarGridSpec(
            num_scalar_prefetch=0,
            grid=(n_p // tile_m,),
            in_specs=[
                pl.BlockSpec((tile_m, h_p), lambda i: (i, 0)),  # x row block
                pl.BlockSpec((d_p, h_p), lambda i: (0, 0)),     # W (resident)
                pl.BlockSpec((1, d_p), lambda i: (0, 0)),        # bias
            ],
            out_specs=pl.BlockSpec((tile_m, d_p), lambda i: (i, 0))),
        compiler_params=pltpu.CompilerParams(
            dimension_semantics=("parallel",)),
    )(xf, wf, bf)


# ---------------------------------------------------------------------------
# Stage 2: candidate scoring + online logsumexp + per-row CE loss
# ---------------------------------------------------------------------------
def _score_loss_kernel(n_valid, tile_m, tile_n, emit_scores, *refs):
    if emit_scores:
        (ctxt_ref, cand_ref, scores_ref, rowloss_ref,
         m_sc, l_sc, diag_sc) = refs
    else:
        (ctxt_ref, cand_ref, rowloss_ref, m_sc, l_sc, diag_sc) = refs
        scores_ref = None

    i = pl.program_id(0)          # row-block index    ("parallel")
    j = pl.program_id(1)          # column-block index ("arbitrary" / reduction)
    n_j = pl.num_programs(1)

    # ---- once per row block: accumulator init -------------------------------
    @pl.when(j == 0)
    def _():
        m_sc[...] = jnp.full_like(m_sc, NEG_INF)
        l_sc[...] = jnp.zeros_like(l_sc)
        diag_sc[...] = jnp.zeros_like(diag_sc)

    # ---- candidate scoring: (tile_m, D) x (tile_n, D)^T on the MXU ----------
    s = lax.dot_general(
        ctxt_ref[...], cand_ref[...],
        dimension_numbers=(((1,), (1,)), ((), ())),
        preferred_element_type=jnp.float32)

    if emit_scores:
        scores_ref[...] = s.astype(scores_ref.dtype)   # bf16 writeback

    # ---- diagonal extraction: only the column block that holds the diagonal -
    # tile_n % tile_m == 0 guarantees the diagonal of row block i lies fully
    # inside column block (i * tile_m) // tile_n.
    @pl.when(j == (i * tile_m) // tile_n)
    def _():
        rows = i * tile_m + lax.broadcasted_iota(jnp.int32, s.shape, 0)
        cols = j * tile_n + lax.broadcasted_iota(jnp.int32, s.shape, 1)
        diag_sc[...] = jnp.sum(jnp.where(rows == cols, s, 0.0),
                               axis=-1, keepdims=True)

    # ---- online logsumexp across column tiles --------------------------------
    def _lse_update(s_val):
        m_prev = m_sc[...]
        m_new = jnp.maximum(m_prev, jnp.max(s_val, axis=-1, keepdims=True))
        alpha = jnp.exp(m_prev - m_new)
        l_sc[...] = alpha * l_sc[...] + jnp.sum(jnp.exp(s_val - m_new),
                                                axis=-1, keepdims=True)
        m_sc[...] = m_new

    if n_valid % tile_n != 0:
        # padded columns live only in the final column block -> mask there only
        @pl.when(j != n_j - 1)
        def _():
            _lse_update(s)

        @pl.when(j == n_j - 1)
        def _():
            col_ids = j * tile_n + lax.broadcasted_iota(jnp.int32, s.shape, 1)
            _lse_update(jnp.where(col_ids < n_valid, s, NEG_INF))
    else:
        _lse_update(s)

    # ---- finalize per-row loss at the last column tile ------------------------
    @pl.when(j == n_j - 1)
    def _():
        lse = m_sc[...] + jnp.log(l_sc[...])
        # lane-dense (unmasked) store: broadcast across 128 lanes, host takes col 0
        rowloss_ref[...] = jnp.broadcast_to(lse - diag_sc[...], rowloss_ref.shape)


# ---------------------------------------------------------------------------
# Kernel wrapper: padding, tiling, pallas_call
# ---------------------------------------------------------------------------
def long_entity_linker_loss(x, w_compress, b_compress, cand, *, return_scores=True):
    """x: [n_b, H_ENC] gathered B-tag encodings, cand: [n_b, D] golden candidates.
    Returns (CE loss with target=arange(n_b), scores [n_b, n_b] f32 or None)."""
    n_b, h_enc = x.shape
    d = cand.shape[1]

    # Rectangular tiles; tile_n % tile_m == 0 keeps the diagonal of a row block
    # inside a single column block and makes the padding divisible by both.
    if n_b >= 2048:
        tile_m, tile_n = 256, 1024
    elif n_b >= 512:
        tile_m, tile_n = 256, 512
    elif n_b >= 256:
        tile_m, tile_n = 256, 256
    else:
        tile_m, tile_n = 128, 128

    n_p = _round_up(n_b, tile_n)
    h_p = _round_up(h_enc, 128)
    d_p = _round_up(d, 128)

    # zero-pad to lane/MXU-friendly shapes; bf16 inputs, f32 accumulation in-kernel
    xf = jnp.zeros((n_p, h_p), jnp.bfloat16).at[:n_b, :h_enc].set(
        x.astype(jnp.bfloat16))
    wf = jnp.zeros((d_p, h_p), jnp.bfloat16).at[:d, :h_enc].set(
        w_compress.astype(jnp.bfloat16))
    bf = jnp.zeros((1, d_p), jnp.float32).at[:, :d].set(
        b_compress.astype(jnp.float32)[None, :])
    cf = jnp.zeros((n_p, d_p), jnp.bfloat16).at[:n_b, :d].set(
        cand.astype(jnp.bfloat16))

    # ---- stage 1: compression (outside the N x N sweep) ----------------------
    ctxt = _compress(xf, wf, bf, tile_m)                  # [n_p, d_p] bf16

    # ---- stage 2: scoring + loss ---------------------------------------------
    grid = (n_p // tile_m, n_p // tile_n)
    kernel = functools.partial(_score_loss_kernel, n_b, tile_m, tile_n,
                               return_scores)

    rowloss_shape = jax.ShapeDtypeStruct((n_p, 128), jnp.float32)
    rowloss_spec = pl.BlockSpec((tile_m, 128), lambda i, j: (i, 0))
    if return_scores:
        out_shape = (jax.ShapeDtypeStruct((n_p, n_p), jnp.bfloat16), rowloss_shape)
        out_specs = (pl.BlockSpec((tile_m, tile_n), lambda i, j: (i, j)),
                     rowloss_spec)
    else:
        out_shape = rowloss_shape
        out_specs = rowloss_spec

    # explicit VMEM budget (double-buffered blocks + scratch), capped for v7x
    ctxt_blk = tile_m * d_p * 2
    cand_blk = tile_n * d_p * 2
    scores_blk = tile_m * tile_n * 2 if return_scores else 0
    rowloss_blk = tile_m * 128 * 4
    scratch_bytes = 3 * tile_m * 128 * 4
    vmem_need = 2 * (ctxt_blk + cand_blk + scores_blk + rowloss_blk) + scratch_bytes
    vmem_limit = int(min(64 * 1024 * 1024, max(vmem_need + (2 << 20), 16 << 20)))

    cost = pl.CostEstimate(
        flops=int(2 * n_p * n_p * d_p),
        transcendentals=int(n_p * n_p),
        bytes_accessed=int(2 * n_p * d_p * 2
                           + (n_p * n_p * 2 if return_scores else 0)
                           + n_p * 128 * 4))

    outs = pl.pallas_call(
        kernel,
        out_shape=out_shape,
        grid_spec=pltpu.PrefetchScalarGridSpec(
            num_scalar_prefetch=0,
            grid=grid,
            in_specs=[
                pl.BlockSpec((tile_m, d_p), lambda i, j: (i, 0)),   # ctxt row block
                pl.BlockSpec((tile_n, d_p), lambda i, j: (j, 0)),   # cand col block
            ],
            out_specs=out_specs,
            scratch_shapes=[
                pltpu.VMEM((tile_m, 1), jnp.float32),   # running max  m
                pltpu.VMEM((tile_m, 1), jnp.float32),   # running sum  l
                pltpu.VMEM((tile_m, 1), jnp.float32),   # diag scores
            ]),
        compiler_params=pltpu.CompilerParams(
            dimension_semantics=("parallel", "arbitrary"),
            vmem_limit_bytes=vmem_limit),
        cost_estimate=cost,
    )(ctxt, cf)

    if return_scores:
        scores_p, row_loss = outs
        scores = scores_p[:n_b, :n_b].astype(jnp.float32)
    else:
        row_loss = outs
        scores = None

    loss = jnp.mean(row_loss[:n_b, 0])          # mean over the real (un-padded) rows
    return loss, scores


# ---------------------------------------------------------------------------
# Full forward (glue in plain JAX + fused hot path in the Pallas kernels)
# ---------------------------------------------------------------------------
def long_entity_linker_forward(token_idx_ctxt, mask_ctxt, golden_tags,
                               golden_cand_enc, golden_cand_mask,
                               emb_table, w_compress, b_compress,
                               n_b, b_tag=1, return_scores=True):
    # TODO(synk): pretrained Longformer/BERT encoder replaced by a deterministic
    # embedding lookup (mask_ctxt / attention unused).
    raw_ctxt_encoding = emb_table[token_idx_ctxt]              # [B, S, H_ENC]

    h_enc = raw_ctxt_encoding.shape[-1]
    flat_enc = raw_ctxt_encoding.reshape(-1, h_enc)            # [B*S, H_ENC]
    flat_tags = golden_tags.reshape(-1)

    # Boolean-mask gathers (static size n_b).  NOTE: jnp.nonzero(..., size=n_b)
    # pads missing matches with index 0 -- callers must guarantee exactly n_b
    # B-tags / golden candidates, as the original torch code implicitly does.
    tag_idx = jnp.nonzero(flat_tags == b_tag, size=n_b)[0]
    x = flat_enc[tag_idx]                                       # [n_b, H_ENC]

    cand_idx = jnp.nonzero(golden_cand_mask, size=n_b)[0]
    cand = golden_cand_enc[cand_idx]                            # [n_b, D]

    return long_entity_linker_loss(x, w_compress, b_compress, cand,
                                   return_scores=return_scores)


# ---------------------------------------------------------------------------
# Demo
# ---------------------------------------------------------------------------
if __name__ == "__main__":
    key = jax.random.PRNGKey(0)

    # small synthetic config
    B, S = 2, 8          # batch, sequence length
    V = 50               # vocab size
    H_ENC = 32           # encoder hidden dim  (longformer_output_dim)
    D = 16               # cand_emb_dim  (!= H_ENC -> linear_compression exists)
    N_B = 8              # number of B-tag tokens == number of golden candidates
    C_TOTAL = 12         # total golden candidate rows before masking

    k0, k1, k2, k3, k4 = jax.random.split(key, 5)

    emb_table = jax.random.normal(k0, (V, H_ENC), dtype=jnp.float32) * 0.1
    w_compress = jax.random.normal(k1, (D, H_ENC), dtype=jnp.float32) * 0.1  # nn.Linear(H_ENC, D)
    b_compress = jax.random.normal(k2, (D,), dtype=jnp.float32) * 0.01

    token_idx_ctxt = jax.random.randint(k3, (B, S), 0, V, dtype=jnp.int32)
    mask_ctxt = jnp.ones((B, S), dtype=jnp.int32)

    # golden_tags: exactly N_B = 8 positions tagged with b_tag = 1 (4 per row)
    golden_tags = jnp.array([[1, 0, 1, 0, 1, 0, 1, 0],
                             [0, 1, 0, 1, 0, 1, 0, 1]], dtype=jnp.int32)

    golden_cand_enc = jax.random.normal(k4, (C_TOTAL, D), dtype=jnp.float32)
    golden_cand_mask = jnp.array(
        [True, True, False, True, True, False, True, True,
         False, True, False, True], dtype=bool)  # 8 True

    # full path (loss + scores)
    loss, scores = long_entity_linker_forward(
        token_idx_ctxt, mask_ctxt, golden_tags,
        golden_cand_enc, golden_cand_mask,
        emb_table, w_compress, b_compress,
        n_b=N_B, b_tag=1, return_scores=True)
    jax.block_until_ready((loss, scores))

    # loss-only path (no N x N scores writeback)
    loss_only, _ = long_entity_linker_forward(
        token_idx_ctxt, mask_ctxt, golden_tags,
        golden_cand_enc, golden_cand_mask,
        emb_table, w_compress, b_compress,
        n_b=N_B, b_tag=1, return_scores=False)
    jax.block_until_ready(loss_only)

    # pure-JAX f32 reference for a sanity check
    raw = emb_table[token_idx_ctxt].reshape(-1, H_ENC)
    tag_idx = jnp.nonzero(golden_tags.reshape(-1) == 1, size=N_B)[0]
    cand_idx = jnp.nonzero(golden_cand_mask, size=N_B)[0]
    ctxt_ref = raw[tag_idx] @ w_compress.T + b_compress
    scores_ref = ctxt_ref @ golden_cand_enc[cand_idx].T
    lse_ref = jax.scipy.special.logsumexp(scores_ref, axis=-1)
    loss_ref = jnp.mean(lse_ref - jnp.diagonal(scores_ref))

    assert scores.shape == (N_B, N_B)
    assert bool(jnp.all(jnp.isfinite(scores)))
    assert bool(jnp.isfinite(loss))
    assert bool(jnp.allclose(scores, scores_ref, atol=3e-2, rtol=3e-2)), \
        "scores mismatch vs reference"
    assert bool(jnp.allclose(loss, loss_ref, atol=3e-2, rtol=3e-2)), \
        "loss mismatch vs reference"
    assert bool(jnp.allclose(loss_only, loss_ref, atol=3e-2, rtol=3e-2)), \
        "loss-only mode mismatch vs reference"
    print("KERNEL_OK")
</pallas_src>

<mosaic_0001>
module attributes {stable_mosaic.version = 11 : i64} {
  func.func @_compress_kernel(%arg0: i32, %arg1: memref<128x128xbf16, #tpu.memory_space<vmem>>, %arg2: memref<128x128xbf16, #tpu.memory_space<vmem>>, %arg3: memref<1x128xf32, #tpu.memory_space<vmem>>, %arg4: memref<128x128xbf16, #tpu.memory_space<vmem>>) attributes {dimension_semantics = [#tpu.dimension_semantics<parallel>], iteration_bounds = array<i64: 1>, scalar_prefetch = 0 : i64, scratch_operands = 0 : i64, tpu.core_type = #tpu.core_type<tc>, window_params = [{transform_indices = @transform_0, window_bounds = array<i64: 128, 128>}, {pipeline_mode = #tpu.pipeline_mode<synchronous>, transform_indices = @transform_1, window_bounds = array<i64: 128, 128>}, {pipeline_mode = #tpu.pipeline_mode<synchronous>, transform_indices = @transform_2, window_bounds = array<i64: 1, 128>}, {transform_indices = @transform_3, window_bounds = array<i64: 128, 128>}]} {
    %c0 = arith.constant 0 : index
    %c0_0 = arith.constant 0 : index
    %0 = vector.load %arg1[%c0, %c0_0] : memref<128x128xbf16, #tpu.memory_space<vmem>>, vector<128x128xbf16>
    %c0_1 = arith.constant 0 : index
    %c0_2 = arith.constant 0 : index
    %1 = vector.load %arg2[%c0_1, %c0_2] : memref<128x128xbf16, #tpu.memory_space<vmem>>, vector<128x128xbf16>
    %cst = arith.constant dense<0.000000e+00> : vector<128x128xf32>
    %2 = tpu.matmul %0, %1, %cst {dimension_numbers = #tpu.dot_dimension_numbers<[1], [1], [0], [0], [0, 0, 1, 0], [], []>} : vector<128x128xbf16>, vector<128x128xbf16>, vector<128x128xf32> -> vector<128x128xf32>
    %c0_3 = arith.constant 0 : index
    %c0_4 = arith.constant 0 : index
    %3 = vector.load %arg3[%c0_3, %c0_4] : memref<1x128xf32, #tpu.memory_space<vmem>>, vector<1x128xf32>
    %4 = vector.broadcast %3 : vector<1x128xf32> to vector<128x128xf32>
    %5 = arith.addf %2, %4 : vector<128x128xf32>
    %6 = arith.truncf %5 : vector<128x128xf32> to vector<128x128xbf16>
    %c0_5 = arith.constant 0 : index
    %c0_6 = arith.constant 0 : index
    %7 = vector.load %arg4[%c0_5, %c0_6] : memref<128x128xbf16, #tpu.memory_space<vmem>>, vector<128x128xbf16>
    tpu.vector_store %arg4[%c0_5, %c0_6], %6 {strides = array<i32>} : memref<128x128xbf16, #tpu.memory_space<vmem>>, vector<128x128xbf16>,
    return
  }
  func.func @transform_0(%arg0: i32) -> (i32, i32) {
    %c0_i32 = arith.constant 0 : i32
    %c0_i32_0 = arith.constant 0 : i32
    return %arg0, %c0_i32 : i32, i32
  }
  func.func @transform_1(%arg0: i32) -> (i32, i32) {
    %c0_i32 = arith.constant 0 : i32
    %c0_i32_0 = arith.constant 0 : i32
    %c0_i32_1 = arith.constant 0 : i32
    return %c0_i32, %c0_i32_0 : i32, i32
  }
  func.func @transform_2(%arg0: i32) -> (i32, i32) {
    %c0_i32 = arith.constant 0 : i32
    %c0_i32_0 = arith.constant 0 : i32
    %c0_i32_1 = arith.constant 0 : i32
    return %c0_i32, %c0_i32_0 : i32, i32
  }
  func.func @transform_3(%arg0: i32) -> (i32, i32) {
    %c0_i32 = arith.constant 0 : i32
    %c0_i32_0 = arith.constant 0 : i32
    return %arg0, %c0_i32 : i32, i32
  }
}

</mosaic_0001>

<llo_original>
// kernel: tpu_custom_call.1
$region0: #{tpu_custom_call.1}
  #allocation0 [shape = 'u32[]', space=smem, size = 0x4, offset = 0x4, fixed_abs, tag = 'smem constant byte address 0x4 - core index']
  #allocation1 [shape = 'u32[144,128]{1,0:T(1,128)}', space=vmem, size = 0x12000, scoped, tag = 'internal scratch']
  %s0 = inlined_call_operand.hbm [shape: bf16[128,128], index: 0, kind: input, shape index: {}]
  %s1 = inlined_call_operand.hbm [shape: bf16[128,128], index: 1, kind: input, shape index: {}]
  %s2 = inlined_call_operand.vmem [shape: f32[1,128], index: 2, kind: input, shape index: {}]
  %s3 = inlined_call_operand.hbm [shape: bf16[128,128], index: 3, kind: output, shape index: {}]
  %s4 = sld [smem:[#allocation0]]
  $region30: #{tpu_custom_call.1} parent=0
    _
  %s6 = ssub.s32 1, %s4
  %s7 = scalar_select 0, %s6, %s4
  $region1: #{tpu_custom_call.1} parent=0
    #allocation2 [shape = 'u8[32768]{0}', space=vmem, size = 0x8000, scoped, tag = 'input window, operand 0, single buffered']
    #allocation3 [shape = 's32[1]{0}', space=sflag, size = 0x4, scoped, tag = 'scoped memory for tpu_custom_call.1']
    #allocation4 [shape = 's32[1]{0}', space=sflag, size = 0x4, scoped, tag = 'scoped memory for tpu_custom_call.1']
    #allocation5 [shape = 'u8[32768]{0}', space=vmem, size = 0x8000, scoped, tag = 'input window, operand 1, single buffered']
    #allocation6 [shape = 's32[1]{0}', space=sflag, size = 0x4, scoped, tag = 'scoped memory for tpu_custom_call.1']
    #allocation7 [shape = 'u8[32768]{0}', space=vmem, size = 0x8000, scoped, tag = 'output window, operand 0, single buffered']
    %8 = vsyncpa [#allocation3], 0
    %9 = vsyncpa [#allocation6], 0
    %10 = vsyncpa [#allocation4], 0
    // Predicated region
    $region2: #{tpu_custom_call.1} parent=1 // pred_check
      _
    $region3: #{tpu_custom_call.1} parent=1 // pred_check_branch
      %12 = sbr.rel (0) target = $region5
    $region4: #{tpu_custom_call.1} parent=1 // pred_region
      %s14 = ssub.s32 1024, 1024
      %15 = vsyncadd [#allocation3], %s14
      %s16 = sshll.u32 [#allocation2], 4
      %s17 = int_to_ptr.vmem [resolvable:$true] %s16
      %22 = dma.hbm_to_vmem [thread:$0]  %s0, 1024, %s17, [#allocation3], 64, 64, 4
    $region5: #{tpu_custom_call.1} parent=1 // pred_fallthru
      _
    // Predicated region
    $region6: #{tpu_custom_call.1} parent=1 // pred_check
      _
    $region7: #{tpu_custom_call.1} parent=1 // pred_check_branch
      %24 = sbr.rel (0) target = $region9
    $region8: #{tpu_custom_call.1} parent=1 // pred_region
      %s26 = ssub.s32 1024, 1024
      %27 = vsyncadd [#allocation6], %s26
      %s28 = sshll.u32 [#allocation5], 4
      %s29 = int_to_ptr.vmem [resolvable:$true] %s28
      %34 = dma.hbm_to_vmem [thread:$0]  %s1, 1024, %s29, [#allocation6], 64, 64, 4
    $region9: #{tpu_custom_call.1} parent=1 // pred_fallthru
      _
    // Predicated region
    $region10: #{tpu_custom_call.1} parent=1 // pred_check
      _
    $region11: #{tpu_custom_call.1} parent=1 // pred_check_branch
      %36 = sbr.rel (0) target = $region13
    $region12: #{tpu_custom_call.1} parent=1 // pred_region
      _
    $region13: #{tpu_custom_call.1} parent=1 // pred_fallthru
      _
    // Predicated region
    $region14: #{tpu_custom_call.1} parent=1 // pred_check
      _
    $region15: #{tpu_custom_call.1} parent=1 // pred_check_branch
      %38 = sbr.rel (0) target = $region17
    $region16: #{tpu_custom_call.1} parent=1 // pred_region
      %39 = dma.done [#allocation3], 1024
    $region17: #{tpu_custom_call.1} parent=1 // pred_fallthru
      _
    // Predicated region
    $region18: #{tpu_custom_call.1} parent=1 // pred_check
      _
    $region19: #{tpu_custom_call.1} parent=1 // pred_check_branch
      %41 = sbr.rel (0) target = $region21
    $region20: #{tpu_custom_call.1} parent=1 // pred_region
      %42 = dma.done [#allocation6], 1024
    $region21: #{tpu_custom_call.1} parent=1 // pred_fallthru
      _
    %v44 = vld [vmem:[#allocation2] sm:$0xf]
    %v45 = vld [vmem:[#allocation2 + $0x4] sm:$0xf]
    %v46 = vld [vmem:[#allocation2 + $0x8] sm:$0xf]
    %v47 = vld [vmem:[#allocation2 + $0xc] sm:$0xf]
    %v48 = vld [vmem:[#allocation2 + $0x10] sm:$0xf]
    %v49 = vld [vmem:[#allocation2 + $0x14] sm:$0xf]
    %v50 = vld [vmem:[#allocation2 + $0x18] sm:$0xf]
    %v51 = vld [vmem:[#allocation2 + $0x1c] sm:$0xf]
    %v52 = vld [vmem:[#allocation2 + $0x20] sm:$0xf]
    %v53 = vld [vmem:[#allocation2 + $0x24] sm:$0xf]
    %v54 = vld [vmem:[#allocation2 + $0x28] sm:$0xf]
    %v55 = vld [vmem:[#allocation2 + $0x2c] sm:$0xf]
    %v56 = vld [vmem:[#allocation2 + $0x30] sm:$0xf]
    %v57 = vld [vmem:[#allocation2 + $0x34] sm:$0xf]
    %v58 = vld [vmem:[#allocation2 + $0x38] sm:$0xf]
    %v59 = vld [vmem:[#allocation2 + $0x3c] sm:$0xf]
    %v60 = vld [vmem:[#allocation5] sm:$0xf]
    %v61 = vld [vmem:[#allocation5 + $0x4] sm:$0xf]
    %v62 = vld [vmem:[#allocation5 + $0x8] sm:$0xf]
    %v63 = vld [vmem:[#allocation5 + $0xc] sm:$0xf]
    %v64 = vld [vmem:[#allocation5 + $0x10] sm:$0xf]
    %v65 = vld [vmem:[#allocation5 + $0x14] sm:$0xf]
    %v66 = vld [vmem:[#allocation5 + $0x18] sm:$0xf]
    %v67 = vld [vmem:[#allocation5 + $0x1c] sm:$0xf]
    %v68 = vld [vmem:[#allocation5 + $0x20] sm:$0xf]
    %v69 = vld [vmem:[#allocation5 + $0x24] sm:$0xf]
    %v70 = vld [vmem:[#allocation5 + $0x28] sm:$0xf]
    %v71 = vld [vmem:[#allocation5 + $0x2c] sm:$0xf]
    %v72 = vld [vmem:[#allocation5 + $0x30] sm:$0xf]
    %v73 = vld [vmem:[#allocation5 + $0x34] sm:$0xf]
    %v74 = vld [vmem:[#allocation5 + $0x38] sm:$0xf]
    %v75 = vld [vmem:[#allocation5 + $0x3c] sm:$0xf]
    %v76 = vld [vmem:[%s2] sm:$0x1]
    %v78 = vlaneseq
    %v79 = vshrl.u32 %v78, 7
    %v80 = vsub.s32 0, %v79
    %v81 = vrot.slane %v76, %v80
    %v99 = vunpack.c.l.b16 %v44
    %v100 = vunpack.c.l.b16 %v45
    %v101 = vunpack.c.l.b16 %v46
    %v102 = vunpack.c.l.b16 %v47
    %v103 = vunpack.c.l.b16 %v48
    %v104 = vunpack.c.l.b16 %v49
    %v105 = vunpack.c.l.b16 %v50
    %v106 = vunpack.c.l.b16 %v51
    %v107 = vunpack.c.l.b16 %v52
    %v108 = vunpack.c.l.b16 %v53
    %v109 = vunpack.c.l.b16 %v54
    %v110 = vunpack.c.l.b16 %v55
    %v111 = vunpack.c.l.b16 %v56
    %v112 = vunpack.c.l.b16 %v57
    %v113 = vunpack.c.l.b16 %v58
    %v114 = vunpack.c.l.b16 %v59
    %v115 = vpack.c.b16 %v100, %v99
    %v116 = vpack.c.b16 %v102, %v101
    %v117 = vpack.c.b16 %v104, %v103
    %v118 = vpack.c.b16 %v106, %v105
    %v119 = vpack.c.b16 %v108, %v107
    %v120 = vpack.c.b16 %v110, %v109
    %v121 = vpack.c.b16 %v112, %v111
    %v122 = vpack.c.b16 %v114, %v113
    %v147 = vunpack.c.l.b16 %v60
    %v148 = vunpack.c.l.b16 %v61
    %v149 = vunpack.c.l.b16 %v62
    %v150 = vunpack.c.l.b16 %v63
    %v151 = vunpack.c.l.b16 %v64
    %v152 = vunpack.c.l.b16 %v65
    %v153 = vunpack.c.l.b16 %v66
    %v154 = vunpack.c.l.b16 %v67
    %v155 = vunpack.c.l.b16 %v68
    %v156 = vunpack.c.l.b16 %v69
    %v157 = vunpack.c.l.b16 %v70
    %v158 = vunpack.c.l.b16 %v71
    %v159 = vunpack.c.l.b16 %v72
    %v160 = vunpack.c.l.b16 %v73
    %v161 = vunpack.c.l.b16 %v74
    %v162 = vunpack.c.l.b16 %v75
    %v163 = vpack.c.b16 %v148, %v147
    %v164 = vpack.c.b16 %v150, %v149
    %v165 = vpack.c.b16 %v152, %v151
    %v166 = vpack.c.b16 %v154, %v153
    %v167 = vpack.c.b16 %v156, %v155
    %v168 = vpack.c.b16 %v158, %v157
    %v169 = vpack.c.b16 %v160, %v159
    %v170 = vpack.c.b16 %v162, %v161
    %179 = vmatprep.subr.bf16.mxu0 0
    %180 = vmatpush1.bf16.xpose.msra.mxu0 %v163
    %181 = vmatprep.subr.bf16.mxu0 0
    %182 = vmatpush1.bf16.xpose.msra.mxu0 %v164
    %183 = vmatprep.subr.bf16.mxu0 0
    %184 = vmatpush1.bf16.xpose.msra.mxu0 %v165
    %185 = vmatprep.subr.bf16.mxu0 0
    %186 = vmatpush1.bf16.xpose.msra.mxu0 %v166
    %187 = vmatprep.subr.bf16.mxu0 0
    %188 = vmatpush1.bf16.xpose.msra.mxu0 %v167
    %189 = vmatprep.subr.bf16.mxu0 0
    %190 = vmatpush1.bf16.xpose.msra.mxu0 %v168
    %191 = vmatprep.subr.bf16.mxu0 0
    %192 = vmatpush1.bf16.xpose.msra.mxu0 %v169
    %193 = vmatprep.subr.bf16.mxu0 0
    %194 = vmatpush1.bf16.xpose.msra.mxu0 %v170
    %195 = vmatprep.subr.bf16.mxu0 0
    %196 = vmatpush1.bf16.xpose.msra.mxu0 0
    %197 = vmatprep.subr.bf16.mxu0 0
    %198 = vmatpush1.bf16.xpose.msra.mxu0 0
    %199 = vmatprep.subr.bf16.mxu0 0
    %200 = vmatpush1.bf16.xpose.msra.mxu0 0
    %201 = vmatprep.subr.bf16.mxu0 0
    %202 = vmatpush1.bf16.xpose.msra.mxu0 0
    %203 = vmatprep.subr.bf16.mxu0 0
    %204 = vmatpush1.bf16.xpose.msra.mxu0 0
    %205 = vmatprep.subr.bf16.mxu0 0
    %206 = vmatpush1.bf16.xpose.msra.mxu0 0
    %207 = vmatprep.subr.bf16.mxu0 0
    %208 = vmatpush1.bf16.xpose.msra.mxu0 0
    %209 = vmatprep.subr.bf16.mxu0 0
    %210 = vmatpush1.bf16.xpose.msra.mxu0 0
    %211 = vmatprep.mubr.bf16.mxu0 0
    %212 = vmatmul.mubr.bf16.gmra.mrb[0].mxu0 %v115
    %v213 = vpop.f32.mrb[0].mxu0
    %v214 = vadd.f32 %v81, %v213
    %v215 = vpop.f32.mrb[0].mxu0
    %v216 = vpop.f32.mrb[0].mxu0
    %v217 = vadd.f32 %v81, %v216
    %v218 = vpop.f32.mrb[0].mxu0
    %219 = vmatprep.mubr.bf16.mxu0 0
    %220 = vmatmul.mubr.bf16.gmra.mrb[0].mxu0 %v116
    %v221 = vpop.f32.mrb[0].mxu0
    %v222 = vadd.f32 %v81, %v221
    %v223 = vpop.f32.mrb[0].mxu0
    %v224 = vpop.f32.mrb[0].mxu0
    %v225 = vadd.f32 %v81, %v224
    %v226 = vpop.f32.mrb[0].mxu0
    %227 = vmatprep.mubr.bf16.mxu0 0
    %228 = vmatmul.mubr.bf16.gmra.mrb[0].mxu0 %v117
    %v229 = vpop.f32.mrb[0].mxu0
    %v230 = vadd.f32 %v81, %v229
    %v231 = vpop.f32.mrb[0].mxu0
    %v232 = vpop.f32.mrb[0].mxu0
    %v233 = vadd.f32 %v81, %v232
    %v234 = vpop.f32.mrb[0].mxu0
    %235 = vmatprep.mubr.bf16.mxu0 0
    %236 = vmatmul.mubr.bf16.gmra.mrb[0].mxu0 %v118
    %v237 = vpop.f32.mrb[0].mxu0
    %v238 = vadd.f32 %v81, %v237
    %v239 = vpop.f32.mrb[0].mxu0
    %v240 = vpop.f32.mrb[0].mxu0
    %v241 = vadd.f32 %v81, %v240
    %v242 = vpop.f32.mrb[0].mxu0
    %243 = vmatprep.mubr.bf16.mxu0 0
    %244 = vmatmul.mubr.bf16.gmra.mrb[0].mxu0 %v119
    %v245 = vpop.f32.mrb[0].mxu0
    %v246 = vadd.f32 %v81, %v245
    %v247 = vpop.f32.mrb[0].mxu0
    %v248 = vpop.f32.mrb[0].mxu0
    %v249 = vadd.f32 %v81, %v248
    %v250 = vpop.f32.mrb[0].mxu0
    %251 = vmatprep.mubr.bf16.mxu0 0
    %252 = vmatmul.mubr.bf16.gmra.mrb[0].mxu0 %v120
    %v253 = vpop.f32.mrb[0].mxu0
    %v254 = vadd.f32 %v81, %v253
    %v255 = vpop.f32.mrb[0].mxu0
    %v256 = vpop.f32.mrb[0].mxu0
    %v257 = vadd.f32 %v81, %v256
    %v258 = vpop.f32.mrb[0].mxu0
    %259 = vmatprep.mubr.bf16.mxu0 0
    %260 = vmatmul.mubr.bf16.gmra.mrb[0].mxu0 %v121
    %v261 = vpop.f32.mrb[0].mxu0
    %v262 = vadd.f32 %v81, %v261
    %v263 = vpop.f32.mrb[0].mxu0
    %v264 = vpop.f32.mrb[0].mxu0
    %v265 = vadd.f32 %v81, %v264
    %v266 = vpop.f32.mrb[0].mxu0
    %267 = vmatprep.mubr.bf16.mxu0 0
    %268 = vmatmul.mubr.bf16.gmra.mrb[0].mxu0 %v122
    %v269 = vpop.f32.mrb[0].mxu0
    %v270 = vadd.f32 %v81, %v269
    %v271 = vpop.f32.mrb[0].mxu0
    %v272 = vpop.f32.mrb[0].mxu0
    %v273 = vadd.f32 %v81, %v272
    %v274 = vpop.f32.mrb[0].mxu0
    %275 = vdwg.mxu0
    %v276 = vpack.c.bf16 %v217, %v214
    %v277 = vpack.c.bf16 %v225, %v222
    %v278 = vpack.c.bf16 %v233, %v230
    %v279 = vpack.c.bf16 %v241, %v238
    %v280 = vpack.c.bf16 %v249, %v246
    %v281 = vpack.c.bf16 %v257, %v254
    %v282 = vpack.c.bf16 %v265, %v262
    %v283 = vpack.c.bf16 %v273, %v270
    %v292 = vunpack.c.l.b16 %v276
    %v293 = vunpack.c.h.b16 %v276
    %v294 = vunpack.c.l.b16 %v277
    %v295 = vunpack.c.h.b16 %v277
    %v296 = vunpack.c.l.b16 %v278
    %v297 = vunpack.c.h.b16 %v278
    %v298 = vunpack.c.l.b16 %v279
    %v299 = vunpack.c.h.b16 %v279
    %v300 = vunpack.c.l.b16 %v280
    %v301 = vunpack.c.h.b16 %v280
    %v302 = vunpack.c.l.b16 %v281
    %v303 = vunpack.c.h.b16 %v281
    %v304 = vunpack.c.l.b16 %v282
    %v305 = vunpack.c.h.b16 %v282
    %v306 = vunpack.c.l.b16 %v283
    %v307 = vunpack.c.h.b16 %v283
    %v308 = vpack.c.b16 %v292, %v292
    %v309 = vpack.c.b16 %v293, %v293
    %v310 = vpack.c.b16 %v294, %v294
    %v311 = vpack.c.b16 %v295, %v295
    %v312 = vpack.c.b16 %v296, %v296
    %v313 = vpack.c.b16 %v297, %v297
    %v314 = vpack.c.b16 %v298, %v298
    %v315 = vpack.c.b16 %v299, %v299
    %v316 = vpack.c.b16 %v300, %v300
    %v317 = vpack.c.b16 %v301, %v301
    %v318 = vpack.c.b16 %v302, %v302
    %v319 = vpack.c.b16 %v303, %v303
    %v320 = vpack.c.b16 %v304, %v304
    %v321 = vpack.c.b16 %v305, %v305
    %v322 = vpack.c.b16 %v306, %v306
    %v323 = vpack.c.b16 %v307, %v307
    %340 = vst [vmem:[#allocation7] sm:$0xf] %v308
    %341 = vst [vmem:[#allocation7 + $0x4] sm:$0xf] %v309
    %342 = vst [vmem:[#allocation7 + $0x8] sm:$0xf] %v310
    %343 = vst [vmem:[#allocation7 + $0xc] sm:$0xf] %v311
    %344 = vst [vmem:[#allocation7 + $0x10] sm:$0xf] %v312
    %345 = vst [vmem:[#allocation7 + $0x14] sm:$0xf] %v313
    %346 = vst [vmem:[#allocation7 + $0x18] sm:$0xf] %v314
    %347 = vst [vmem:[#allocation7 + $0x1c] sm:$0xf] %v315
    %348 = vst [vmem:[#allocation7 + $0x20] sm:$0xf] %v316
    %349 = vst [vmem:[#allocation7 + $0x24] sm:$0xf] %v317
    %350 = vst [vmem:[#allocation7 + $0x28] sm:$0xf] %v318
    %351 = vst [vmem:[#allocation7 + $0x2c] sm:$0xf] %v319
    %352 = vst [vmem:[#allocation7 + $0x30] sm:$0xf] %v320
    %353 = vst [vmem:[#allocation7 + $0x34] sm:$0xf] %v321
    %354 = vst [vmem:[#allocation7 + $0x38] sm:$0xf] %v322
    %355 = vst [vmem:[#allocation7 + $0x3c] sm:$0xf] %v323
    // Predicated region
    $region22: #{tpu_custom_call.1} parent=1 // pred_check
      _
    $region23: #{tpu_custom_call.1} parent=1 // pred_check_branch
      %357 = sbr.rel (0) target = $region25
    $region24: #{tpu_custom_call.1} parent=1 // pred_region
      %s359 = ssub.s32 1024, 1024
      %360 = vsyncadd [#allocation4], %s359
      %s361 = sshll.u32 [#allocation7], 4
      %s362 = int_to_ptr.vmem [resolvable:$true] %s361
      %367 = dma.vmem_to_hbm [thread:$0]  %s362, 1024, %s3, [#allocation4], 64, 64, 4
    $region25: #{tpu_custom_call.1} parent=1 // pred_fallthru
      _
    // Predicated region
    $region26: #{tpu_custom_call.1} parent=1 // pred_check
      _
    $region27: #{tpu_custom_call.1} parent=1 // pred_check_branch
      %369 = sbr.rel (0) target = $region29
    $region28: #{tpu_custom_call.1} parent=1 // pred_region
      %370 = dma.done [#allocation4], 1024
    $region29: #{tpu_custom_call.1} parent=1 // pred_fallthru
      _
    %371 = vsyncpa [#allocation3], 1
    %372 = vsyncpa [#allocation6], 1
    %373 = vsyncpa [#allocation4], 1

</llo_original>
